<compile_context>
chip_gen: v7x
topology: tpu7x:2x2x1
jax: 0.10.0
libtpu: 0.0.40
codegen_flags: <defaults>
</compile_context>

<pallas_src>
import jax
import jax.numpy as jnp
from jax.experimental import pallas as pl
from jax.experimental.pallas import tpu as pltpu


# ---------------------------------------------------------------------------
# Kernel: fused patch projection  out = x_patches @ W + b   (f32 accumulate)
# ---------------------------------------------------------------------------
def _patch_proj_kernel(x_ref, w_ref, b_ref, o_ref):
    # x_ref: (TM, K) compute_dtype   w_ref: (K, d_pad) compute_dtype
    # b_ref: (1, d_pad) f32          o_ref: (TM, d_pad) out_dtype
    acc = jnp.dot(x_ref[...], w_ref[...], preferred_element_type=jnp.float32)
    o_ref[...] = (acc + b_ref[...]).astype(o_ref.dtype)


# ---------------------------------------------------------------------------
# Row-tile picker: VMEM-budgeted, multiple-of-8, keeps >= ~8 grid steps.
# ---------------------------------------------------------------------------
def _pick_row_tile(m, k, d_pad, x_itemsize, out_itemsize,
                   tile_budget_bytes=20 * 2**20, max_tm=1024):
    # Double-buffered x tiles + double-buffered out tiles per step.
    per_row = 2 * (k * x_itemsize + d_pad * out_itemsize)
    tm = max(8, min(max_tm, tile_budget_bytes // per_row))
    # Keep >= ~8 pipelined grid steps so megacore (v7x) sharding + the
    # double-buffer pipeline actually engage for medium-sized M.
    tm = min(tm, max(8, pl.cdiv(m, 8)))
    tm = max(8, (tm // 8) * 8)                 # multiple of 8 sublanes
    tm = min(tm, ((m + 7) // 8) * 8)           # never larger than padded row count
    return tm


# ---------------------------------------------------------------------------
# Wrapper: PatchEmbedding.forward
#   x: (B, L, D) -> (B, ceil(L/P), d_model)
#   weight: torch nn.Linear weight, shape (d_model, D*P)  (input index = d*P + p)
#   bias:   (d_model,)
# ---------------------------------------------------------------------------
def patch_embedding(x, weight, bias, *, patch_len,
                    compute_dtype=jnp.bfloat16, out_dtype=jnp.float32):
    B, L, D = x.shape
    P = patch_len
    d_model = weight.shape[0]

    # --- pad L up to a multiple of patch_len; fast path avoids the extra HBM
    #     round trip when no padding is needed (common case).
    pad = (P - L % P) % P
    if pad:
        # TODO(synk): for ragged L, allow_input_fusion on the x operand would let
        # XLA fuse this pad into the pallas_call input instead of materializing.
        x = jnp.pad(x, ((0, 0), (0, pad), (0, 0)))
    N = (L + pad) // P

    # --- patch flatten: pure contiguous reshape, feature index = p*D + d ------
    xp = x.reshape(B * N, P * D).astype(compute_dtype)

    # --- fold torch's (d*P + p) ordering into the weight (one tiny transform) --
    # W2[p*D + d, o] = W[o, d*P + p]
    w = weight.reshape(d_model, D, P).transpose(2, 1, 0).reshape(P * D, d_model)
    w = w.astype(compute_dtype)

    # --- lane-dense output: pad feature dim to a multiple of 128 ---------------
    lane = 128
    d_pad = ((d_model + lane - 1) // lane) * lane
    if d_pad != d_model:
        w = jnp.pad(w, ((0, 0), (0, d_pad - d_model)))
        b = jnp.pad(bias, (0, d_pad - d_model))
    else:
        b = bias
    b = b.astype(jnp.float32).reshape(1, d_pad)   # bias add stays f32

    M = B * N            # total number of patch tokens
    K = P * D            # flattened patch feature size
    x_item = jnp.dtype(compute_dtype).itemsize
    out_item = jnp.dtype(out_dtype).itemsize

    TM = _pick_row_tile(M, K, d_pad, x_item, out_item)
    grid = (pl.cdiv(M, TM),)   # partial last block is masked by Pallas

    # --- weight/bias are grid-invariant; single-buffer them once they get big --
    w_bytes = K * d_pad * x_item
    if w_bytes >= (4 << 20):
        w_spec = pl.BlockSpec((K, d_pad), lambda i: (0, 0), pipeline_mode=pl.Buffered(1))
        b_spec = pl.BlockSpec((1, d_pad), lambda i: (0, 0), pipeline_mode=pl.Buffered(1))
        w_bufs = 1
    else:
        w_spec = pl.BlockSpec((K, d_pad), lambda i: (0, 0))
        b_spec = pl.BlockSpec((1, d_pad), lambda i: (0, 0))
        w_bufs = 2

    # --- explicit scoped-VMEM limit sized from the chosen tiles ----------------
    needed = (2 * TM * K * x_item            # double-buffered x tiles
              + 2 * TM * d_pad * out_item    # double-buffered out tiles
              + w_bufs * K * d_pad * x_item  # resident weight
              + 2 * 8 * d_pad * 4)           # bias (sublane-padded)
    vmem_limit = int(min(max(needed + (8 << 20), 32 << 20), 60 << 20))

    cost = pl.CostEstimate(
        flops=2 * M * K * d_pad,
        transcendentals=0,
        bytes_accessed=M * K * x_item + K * d_pad * x_item
                       + d_pad * 4 + M * d_pad * out_item)

    out = pl.pallas_call(
        _patch_proj_kernel,
        out_shape=jax.ShapeDtypeStruct((M, d_pad), out_dtype),
        grid=grid,
        in_specs=[
            pl.BlockSpec((TM, K), lambda i: (i, 0)),       # row-tiled patch matrix
            w_spec,                                        # weight, resident
            b_spec,                                        # bias, resident
        ],
        out_specs=pl.BlockSpec((TM, d_pad), lambda i: (i, 0)),
        compiler_params=pltpu.CompilerParams(
            dimension_semantics=("parallel",),
            vmem_limit_bytes=vmem_limit),
        cost_estimate=cost,
    )(xp, w, b)

    out = out.reshape(B, N, d_pad)
    if d_pad != d_model:
        # Consumers that tolerate a 128-padded feature dim can skip this slice.
        out = out[..., :d_model]
    return out


# ---------------------------------------------------------------------------
# Pure-JAX reference (mirrors torch: pad -> unfold(1,P,P) -> view -> Linear)
# ---------------------------------------------------------------------------
def patch_embedding_ref(x, weight, bias, *, patch_len):
    B, L, D = x.shape
    P = patch_len
    pad = (P - L % P) % P
    if pad:
        x = jnp.pad(x, ((0, 0), (0, pad), (0, 0)))
    N = (L + pad) // P
    # torch unfold(1, P, P) -> (B, N, D, P); view(B, N, P*D) flattens as d*P + p
    xu = x.reshape(B, N, P, D).transpose(0, 1, 3, 2).reshape(B, N, P * D)
    return xu @ weight.T + bias


# ---------------------------------------------------------------------------
if __name__ == "__main__":
    key = jax.random.PRNGKey(0)
    kx, kw, kb = jax.random.split(key, 3)

    # Main demo: L % patch_len == 0 -> fast path (no pad copy);
    # M = 8*64 = 512 patch tokens -> TM=64, grid=(8,) (pipeline + megacore engage).
    B, L, input_dim = 8, 1024, 4
    patch_len, d_model = 16, 128

    x = jax.random.normal(kx, (B, L, input_dim), dtype=jnp.float32)
    weight = jax.random.normal(kw, (d_model, input_dim * patch_len), jnp.float32) * 0.05
    bias = jax.random.normal(kb, (d_model,), jnp.float32) * 0.05

    fn = jax.jit(patch_embedding,
                 static_argnames=("patch_len", "compute_dtype", "out_dtype"))

    ref = patch_embedding_ref(x, weight, bias, patch_len=patch_len)

    # Default bf16 compute path (f32 accumulation) -> loose tolerance.
    out_bf16 = jax.block_until_ready(fn(x, weight, bias, patch_len=patch_len))
    assert out_bf16.shape == (B, L // patch_len, d_model), out_bf16.shape
    assert jnp.allclose(out_bf16, ref, atol=5e-2, rtol=5e-2), \
        float(jnp.max(jnp.abs(out_bf16 - ref)))

    # f32 compute path -> exact parity with the reference.
    out_f32 = jax.block_until_ready(
        fn(x, weight, bias, patch_len=patch_len, compute_dtype=jnp.float32))
    assert jnp.allclose(out_f32, ref, atol=1e-4, rtol=1e-4), \
        float(jnp.max(jnp.abs(out_f32 - ref)))

    # Ragged L (exercises the pad path) and M=315 (exercises the masked
    # partial last grid block of the cdiv grid).
    B2, L2 = 5, 1000
    x2 = jax.random.normal(kx, (B2, L2, input_dim), dtype=jnp.float32)
    out2 = jax.block_until_ready(fn(x2, weight, bias, patch_len=patch_len))
    ref2 = patch_embedding_ref(x2, weight, bias, patch_len=patch_len)
    expected_N2 = (L2 + patch_len - 1) // patch_len
    assert out2.shape == (B2, expected_N2, d_model), out2.shape
    assert jnp.allclose(out2, ref2, atol=5e-2, rtol=5e-2), \
        float(jnp.max(jnp.abs(out2 - ref2)))

    print("KERNEL_OK")
</pallas_src>

<mosaic_0001>
module attributes {stable_mosaic.version = 11 : i64} {
  func.func @_patch_proj_kernel(%arg0: i32, %arg1: memref<64x64xbf16, #tpu.memory_space<vmem>>, %arg2: memref<64x128xbf16, #tpu.memory_space<vmem>>, %arg3: memref<1x128xf32, #tpu.memory_space<vmem>>, %arg4: memref<64x128xf32, #tpu.memory_space<vmem>>) attributes {dimension_semantics = [#tpu.dimension_semantics<parallel>], iteration_bounds = array<i64: 8>, scalar_prefetch = 0 : i64, scratch_operands = 0 : i64, tpu.core_type = #tpu.core_type<tc>, window_params = [{transform_indices = @transform_0, window_bounds = array<i64: 64, 64>}, {pipeline_mode = #tpu.pipeline_mode<synchronous>, transform_indices = @transform_1, window_bounds = array<i64: 64, 128>}, {pipeline_mode = #tpu.pipeline_mode<synchronous>, transform_indices = @transform_2, window_bounds = array<i64: 1, 128>}, {transform_indices = @transform_3, window_bounds = array<i64: 64, 128>}]} {
    %c0 = arith.constant 0 : index
    %c0_0 = arith.constant 0 : index
    %0 = vector.load %arg1[%c0, %c0_0] : memref<64x64xbf16, #tpu.memory_space<vmem>>, vector<64x64xbf16>
    %c0_1 = arith.constant 0 : index
    %c0_2 = arith.constant 0 : index
    %1 = vector.load %arg2[%c0_1, %c0_2] : memref<64x128xbf16, #tpu.memory_space<vmem>>, vector<64x128xbf16>
    %cst = arith.constant dense<0.000000e+00> : vector<64x128xf32>
    %2 = tpu.matmul %0, %1, %cst {dimension_numbers = #tpu.dot_dimension_numbers<[1], [0], [0], [1], [0, 0, 1, 1], [], []>} : vector<64x64xbf16>, vector<64x128xbf16>, vector<64x128xf32> -> vector<64x128xf32>
    %c0_3 = arith.constant 0 : index
    %c0_4 = arith.constant 0 : index
    %3 = vector.load %arg3[%c0_3, %c0_4] : memref<1x128xf32, #tpu.memory_space<vmem>>, vector<1x128xf32>
    %4 = vector.broadcast %3 : vector<1x128xf32> to vector<64x128xf32>
    %5 = arith.addf %2, %4 : vector<64x128xf32>
    %c0_5 = arith.constant 0 : index
    %c0_6 = arith.constant 0 : index
    %6 = vector.load %arg4[%c0_5, %c0_6] : memref<64x128xf32, #tpu.memory_space<vmem>>, vector<64x128xf32>
    tpu.vector_store %arg4[%c0_5, %c0_6], %5 {strides = array<i32>} : memref<64x128xf32, #tpu.memory_space<vmem>>, vector<64x128xf32>,
    return
  }
  func.func @transform_0(%arg0: i32) -> (i32, i32) {
    %c0_i32 = arith.constant 0 : i32
    %c0_i32_0 = arith.constant 0 : i32
    return %arg0, %c0_i32 : i32, i32
  }
  func.func @transform_1(%arg0: i32) -> (i32, i32) {
    %c0_i32 = arith.constant 0 : i32
    %c0_i32_0 = arith.constant 0 : i32
    %c0_i32_1 = arith.constant 0 : i32
    return %c0_i32, %c0_i32_0 : i32, i32
  }
  func.func @transform_2(%arg0: i32) -> (i32, i32) {
    %c0_i32 = arith.constant 0 : i32
    %c0_i32_0 = arith.constant 0 : i32
    %c0_i32_1 = arith.constant 0 : i32
    return %c0_i32, %c0_i32_0 : i32, i32
  }
  func.func @transform_3(%arg0: i32) -> (i32, i32) {
    %c0_i32 = arith.constant 0 : i32
    %c0_i32_0 = arith.constant 0 : i32
    return %arg0, %c0_i32 : i32, i32
  }
}

</mosaic_0001>

<llo_original>
// kernel: patch_embedding.1
$region0: #{patch_embedding.1}
  #allocation0 [shape = 'u32[]', space=smem, size = 0x4, offset = 0x4, fixed_abs, tag = 'smem constant byte address 0x4 - core index']
  #allocation1 [shape = 'u32[144,128]{1,0:T(1,128)}', space=vmem, size = 0x12000, scoped, tag = 'internal scratch']
  %s0 = inlined_call_operand.vmem [shape: bf16[512,64], index: 0, kind: input, shape index: {}]
  %s1 = inlined_call_operand.vmem [shape: bf16[64,128], index: 1, kind: input, shape index: {}]
  %s2 = inlined_call_operand.vmem [shape: f32[1,128], index: 2, kind: input, shape index: {}]
  %s3 = inlined_call_operand.hbm [shape: f32[512,128], index: 3, kind: output, shape index: {}]
  %s4 = sld [smem:[#allocation0]]
  $region45: #{patch_embedding.1} parent=0
    _
  %s6 = ssub.s32 1, %s4
  %s7 = scalar_select 0, %s6, %s4
  $region1: #{patch_embedding.1} parent=0
    #allocation2 [shape = 'u8[65536]{0}', space=vmem, size = 0x10000, scoped, tag = 'output window, operand 0']
    #allocation3 [shape = 's32[2]{0}', space=sflag, size = 0x8, scoped, tag = 'scoped memory for patch_embedding.1']
    %8 = vsyncpa [#allocation3], 0
    %s9 = scalar_lea.sflag [#allocation3], 1
    %10 = vsyncpa %s9, 0
    loop: start=0, step=1, limit=10
    $region2: #{patch_embedding.1} parent=1 // loop_pre_header
      _
    $region3: #{patch_embedding.1} parent=1 // loop_header
      %s12 = sphi 0, %s16
      %p13 = scmp.ge.s32.totalorder %s12, 10
      %s22 = sphi 0, %s24
      %s25 = sphi 0, %s22
      %s26 = sphi 0, %s25
      %s42 = sphi 0, %s26
      %s46 = sphi 0, %s46
      %s48 = sphi 0, %s46
      %s49 = sphi 0, %s48
      %s63 = sphi 0, %s49
      %s67 = sphi 0, %s67
      %s69 = sphi 0, %s67
      %s70 = sphi 0, %s69
      %s84 = sphi 0, %s70
      %s90 = sphi 0, %s92
      %s93 = sphi 0, %s90
      %s94 = sphi 0, %s93
      %s110 = sphi 0, %s94
    $region4: #{patch_embedding.1} parent=1 // loop_header_branch
      %15 = sbr.rel (%p13) target = $region8
    $region5: #{patch_embedding.1} parent=1 // loop_body
      %s17 = ssub.s32 %s12, 1
      %s18 = ssub.s32 %s12, 2
      %s19 = sadd.s32 %s12, 1
      %s20 = ssub.s32 %s12, %s19
      %p21 = scmp.eq.s32.totalorder %s20, 0
      %s23 = sadd.s32 %s22, 1
      %s24 = scalar_select %p21, %s22, %s23
      %p27 = pneg %p21
      %p28 = scmp.eq.s32.totalorder %s12, 7
      %p29 = por %p27, %p28
      %p30 = scmp.ne.s32.totalorder %s22, %s25
      %p31 = scmp.eq.s32.totalorder %s12, 0
      %p32 = por %p30, %p31
      %p33 = scmp.ne.s32.totalorder %s22, %s25
      %p34 = scmp.eq.s32.totalorder %s17, 7
      %p35 = por %p33, %p34
      %p36 = scmp.ne.s32.totalorder %s25, %s26
      %p37 = scmp.eq.s32.totalorder %s17, 0
      %p38 = por %p36, %p37
      %p39 = scmp.ne.s32.totalorder %s25, %s26
      %p40 = scmp.eq.s32.totalorder %s18, 7
      %p41 = por %p39, %p40
      %p43 = scmp.ne.s32.totalorder %s26, %s42
      %p44 = scmp.eq.s32.totalorder %s18, 0
      %p45 = por %p43, %p44
      %s47 = sadd.s32 %s46, 1
      %p50 = scmp.eq.s32.totalorder %s12, 7
      %p51 = scmp.ne.s32.totalorder %s46, %s48
      %p52 = scmp.eq.s32.totalorder %s12, 0
      %p53 = por %p51, %p52
      %p54 = scmp.ne.s32.totalorder %s46, %s48
      %p55 = scmp.eq.s32.totalorder %s17, 7
      %p56 = por %p54, %p55
      %p57 = scmp.ne.s32.totalorder %s48, %s49
      %p58 = scmp.eq.s32.totalorder %s17, 0
      %p59 = por %p57, %p58
      %p60 = scmp.ne.s32.totalorder %s48, %s49
      %p61 = scmp.eq.s32.totalorder %s18, 7
      %p62 = por %p60, %p61
      %p64 = scmp.ne.s32.totalorder %s49, %s63
      %p65 = scmp.eq.s32.totalorder %s18, 0
      %p66 = por %p64, %p65
      %s68 = sadd.s32 %s67, 1
      %p71 = scmp.eq.s32.totalorder %s12, 7
      %p72 = scmp.ne.s32.totalorder %s67, %s69
      %p73 = scmp.eq.s32.totalorder %s12, 0
      %p74 = por %p72, %p73
      %p75 = scmp.ne.s32.totalorder %s67, %s69
      %p76 = scmp.eq.s32.totalorder %s17, 7
      %p77 = por %p75, %p76
      %p78 = scmp.ne.s32.totalorder %s69, %s70
      %p79 = scmp.eq.s32.totalorder %s17, 0
      %p80 = por %p78, %p79
      %p81 = scmp.ne.s32.totalorder %s69, %s70
      %p82 = scmp.eq.s32.totalorder %s18, 7
      %p83 = por %p81, %p82
      %p85 = scmp.ne.s32.totalorder %s70, %s84
      %p86 = scmp.eq.s32.totalorder %s18, 0
      %p87 = por %p85, %p86
      %s88 = ssub.s32 %s12, %s19
      %p89 = scmp.eq.s32.totalorder %s88, 0
      %s91 = sadd.s32 %s90, 1
      %s92 = scalar_select %p89, %s90, %s91
      %p95 = pneg %p89
      %p96 = scmp.eq.s32.totalorder %s12, 7
      %p97 = por %p95, %p96
      %p98 = scmp.ne.s32.totalorder %s90, %s93
      %p99 = scmp.eq.s32.totalorder %s12, 0
      %p100 = por %p98, %p99
      %p101 = scmp.ne.s32.totalorder %s90, %s93
      %p102 = scmp.eq.s32.totalorder %s17, 7
      %p103 = por %p101, %p102
      %p104 = scmp.ne.s32.totalorder %s93, %s94
      %p105 = scmp.eq.s32.totalorder %s17, 0
      %p106 = por %p104, %p105
      %p107 = scmp.ne.s32.totalorder %s93, %s94
      %p108 = scmp.eq.s32.totalorder %s18, 7
      %p109 = por %p107, %p108
      %p111 = scmp.ne.s32.totalorder %s94, %s110
      %p112 = scmp.eq.s32.totalorder %s18, 0
      %p113 = por %p111, %p112
      %p114 = scmp.le.s32.totalorder 1, %s12
      %p115 = scmp.lt.s32.totalorder %s12, 9
      %p116 = pnand %p114, %p115
      %p117 = pneg %p116
      // Predicated region
      $region9: #{patch_embedding.1} parent=5 // pred_check
        _
      $region10: #{patch_embedding.1} parent=5 // pred_check_branch
        %119 = sbr.rel (%p116) target = $region12
      $region11: #{patch_embedding.1} parent=5 // pred_region
        %s120 = ssub.s32 %s12, 1
        // Predicated region
        $region13: #{patch_embedding.1} parent=11 // pred_check
          %p121 = pneg %p59
        $region14: #{patch_embedding.1} parent=11 // pred_check_branch
          %123 = sbr.rel (%p121) target = $region16
        $region15: #{patch_embedding.1} parent=11 // pred_region
          _
        $region16: #{patch_embedding.1} parent=11 // pred_fallthru
          _
        // Predicated region
        $region17: #{patch_embedding.1} parent=11 // pred_check
          %p124 = pneg %p80
        $region18: #{patch_embedding.1} parent=11 // pred_check_branch
          %126 = sbr.rel (%p124) target = $region20
        $region19: #{patch_embedding.1} parent=11 // pred_region
          _
        $region20: #{patch_embedding.1} parent=11 // pred_fallthru
          _
      $region12: #{patch_embedding.1} parent=5 // pred_fallthru
        _
      %p127 = scmp.lt.s32.totalorder %s12, 8
      // Predicated region
      $region21: #{patch_embedding.1} parent=5 // pred_check
        %p128 = pneg %p127
      $region22: #{patch_embedding.1} parent=5 // pred_check_branch
        %130 = sbr.rel (%p128) target = $region24
      $region23: #{patch_embedding.1} parent=5 // pred_region
        // Predicated region
        $region25: #{patch_embedding.1} parent=23 // pred_check
          %p131 = pneg %p32
        $region26: #{patch_embedding.1} parent=23 // pred_check_branch
          %133 = sbr.rel (%p131) target = $region28
        $region27: #{patch_embedding.1} parent=23 // pred_region
          %s134 = smul.u32 8, %s12
          %p135 = scmp.lt.s32.totalorder %s134, 63
          %s136 = scalar_select %p135, %s134, 63
          %s137 = smul.addr %s136, 4
          %s138 = scalar_lea.vmem %s0, %s137
          %s139 = smul.u32 8, %s12
        $region28: #{patch_embedding.1} parent=23 // pred_fallthru
          _
      $region24: #{patch_embedding.1} parent=5 // pred_fallthru
        _
      %p140 = scmp.le.s32.totalorder 1, %s12
      %p141 = scmp.lt.s32.totalorder %s12, 9
      %p142 = pnand %p140, %p141
      %p143 = pneg %p142
      // Predicated region
      $region29: #{patch_embedding.1} parent=5 // pred_check
        _
      $region30: #{patch_embedding.1} parent=5 // pred_check_branch
        %145 = sbr.rel (%p142) target = $region32
      $region31: #{patch_embedding.1} parent=5 // pred_region
        %s146 = ssub.s32 %s12, 1
        %s147 = smul.u32 8, %s17
        %p148 = scmp.lt.s32.totalorder %s147, 63
        %s149 = scalar_select %p148, %s147, 63
        %s150 = smul.addr %s149, 4
        %s151 = scalar_lea.vmem %s0, %s150
        %p152 = pneg %p38
        %p153 = pneg %p35
        %p154 = pneg %p59
        %p155 = pneg %p56
        %p156 = pneg %p80
        %p157 = pneg %p77
        %p158 = pneg %p106
        %p159 = pneg %p103
        %s160 = sand.u32 %s93, 1
        %s161 = scalar_lea.sflag [#allocation3], %s160
        %s162 = sand.u32 %s93, 1
        %s163 = smul.addr %s162, 64
        %s164 = scalar_lea.vmem [#allocation2], %s163
        %s165 = smul.u32 8, %s17
        %p166 = scmp.lt.s32.totalorder %s165, 63
        %s167 = scalar_select %p166, %s165, 63
        %s168 = smul.addr %s167, 4
        %s169 = scalar_lea.vmem %s0, %s168
        %s170 = smul.u32 8, %s17
        %s171 = smul.u32 8, %s17
        %v173 = vld [vmem:[%s169] sm:$0xf]
        %v174 = vld [vmem:[%s169 + $0x4] sm:$0xf]
        %v175 = vld [vmem:[%s169 + $0x8] sm:$0xf]
        %v176 = vld [vmem:[%s169 + $0xc] sm:$0xf]
        %v177 = vld [vmem:[%s169 + $0x10] sm:$0xf]
        %v178 = vld [vmem:[%s169 + $0x14] sm:$0xf]
        %v179 = vld [vmem:[%s169 + $0x18] sm:$0xf]
        %v180 = vld [vmem:[%s169 + $0x1c] sm:$0xf]
        %v181 = vld [vmem:[%s1] sm:$0xf]
        %v182 = vld [vmem:[%s1 + $0x4] sm:$0xf]
        %v183 = vld [vmem:[%s1 + $0x8] sm:$0xf]
        %v184 = vld [vmem:[%s1 + $0xc] sm:$0xf]
        %v185 = vld [vmem:[%s1 + $0x10] sm:$0xf]
        %v186 = vld [vmem:[%s1 + $0x14] sm:$0xf]
        %v187 = vld [vmem:[%s1 + $0x18] sm:$0xf]
        %v188 = vld [vmem:[%s1 + $0x1c] sm:$0xf]
        %v189 = vld [vmem:[%s2] sm:$0x1]
        %v191 = vlaneseq
        %v192 = vshrl.u32 %v191, 7
        %v193 = vsub.s32 0, %v192
        %v194 = vrot.slane %v189, %v193
        %v204 = vunpack.c.l.b16 %v173
        %v205 = vunpack.c.l.b16 %v174
        %v206 = vunpack.c.l.b16 %v175
        %v207 = vunpack.c.l.b16 %v176
        %v208 = vunpack.c.l.b16 %v177
        %v209 = vunpack.c.l.b16 %v178
        %v210 = vunpack.c.l.b16 %v179
        %v211 = vunpack.c.l.b16 %v180
        %v212 = vpack.c.b16 %v205, %v204
        %v213 = vpack.c.b16 %v207, %v206
        %v214 = vpack.c.b16 %v209, %v208
        %v215 = vpack.c.b16 %v211, %v210
        %v224 = vunpack.c.l.b16 %v181
        %v225 = vunpack.c.l.b16 %v182
        %v226 = vunpack.c.l.b16 %v183
        %v227 = vunpack.c.l.b16 %v184
        %v228 = vunpack.c.l.b16 %v185
        %v229 = vunpack.c.l.b16 %v186
        %v230 = vunpack.c.l.b16 %v187
        %v231 = vunpack.c.l.b16 %v188
        %v232 = vpack.c.b16 %v225, %v224
        %v233 = vpack.c.b16 %v227, %v226
        %v234 = vpack.c.b16 %v229, %v228
        %v235 = vpack.c.b16 %v231, %v230
        %vm240 = vcmask 523264
        %v242 = vsel %vm240, %v212, 0
        %v245 = vsel %vm240, %v213, 0
        %v248 = vsel %vm240, %v214, 0
        %v251 = vsel %vm240, %v215, 0
        %253 = vmatprep.subr.bf16.mxu0 0
        %254 = vmatpush1.bf16.msra.mxu0 %v232
        %255 = vmatprep.subr.bf16.mxu0 0
        %256 = vmatpush1.bf16.msra.mxu0 %v233
        %257 = vmatprep.subr.bf16.mxu0 0
        %258 = vmatpush1.bf16.msra.mxu0 %v234
        %259 = vmatprep.subr.bf16.mxu0 0
        %260 = vmatpush1.bf16.msra.mxu0 %v235
        %261 = vmatprep.subr.bf16.mxu0 0
        %262 = vmatpush1.bf16.msra.mxu0 0
        %263 = vmatprep.subr.bf16.mxu0 0
        %264 = vmatpush1.bf16.msra.mxu0 0
        %265 = vmatprep.subr.bf16.mxu0 0
        %266 = vmatpush1.bf16.msra.mxu0 0
        %267 = vmatprep.subr.bf16.mxu0 0
        %268 = vmatpush1.bf16.msra.mxu0 0
        %269 = vmatprep.subr.bf16.mxu0 0
        %270 = vmatpush1.bf16.msra.mxu0 0
        %271 = vmatprep.subr.bf16.mxu0 0
        %272 = vmatpush1.bf16.msra.mxu0 0
        %273 = vmatprep.subr.bf16.mxu0 0
        %274 = vmatpush1.bf16.msra.mxu0 0
        %275 = vmatprep.subr.bf16.mxu0 0
        %276 = vmatpush1.bf16.msra.mxu0 0
        %277 = vmatprep.subr.bf16.mxu0 0
        %278 = vmatpush1.bf16.msra.mxu0 0
        %279 = vmatprep.subr.bf16.mxu0 0
        %280 = vmatpush1.bf16.msra.mxu0 0
        %281 = vmatprep.subr.bf16.mxu0 0
        %282 = vmatpush1.bf16.msra.mxu0 0
        %283 = vmatprep.subr.bf16.mxu0 0
        %284 = vmatpush1.bf16.msra.mxu0 0
        %285 = vmatprep.mubr.bf16.mxu0 0
        %286 = vmatmul.mubr.bf16.gmra.mrb[0].mxu0 %v242
        %v287 = vpop.f32.mrb[0].mxu0
        %v288 = vadd.f32 %v194, %v287
        %v289 = vpop.f32.mrb[0].mxu0
        %v290 = vpop.f32.mrb[0].mxu0
        %v291 = vadd.f32 %v194, %v290
        %v292 = vpop.f32.mrb[0].mxu0
        %293 = vmatprep.mubr.bf16.mxu0 0
        %294 = vmatmul.mubr.bf16.gmra.mrb[0].mxu0 %v245
        %v295 = vpop.f32.mrb[0].mxu0
        %v296 = vadd.f32 %v194, %v295
        %v297 = vpop.f32.mrb[0].mxu0
        %v298 = vpop.f32.mrb[0].mxu0
        %v299 = vadd.f32 %v194, %v298
        %v300 = vpop.f32.mrb[0].mxu0
        %301 = vmatprep.mubr.bf16.mxu0 0
        %302 = vmatmul.mubr.bf16.gmra.mrb[0].mxu0 %v248
        %v303 = vpop.f32.mrb[0].mxu0
        %v304 = vadd.f32 %v194, %v303
        %v305 = vpop.f32.mrb[0].mxu0
        %v306 = vpop.f32.mrb[0].mxu0
        %v307 = vadd.f32 %v194, %v306
        %v308 = vpop.f32.mrb[0].mxu0
        %309 = vmatprep.mubr.bf16.mxu0 0
        %310 = vmatmul.mubr.bf16.gmra.mrb[0].mxu0 %v251
        %v311 = vpop.f32.mrb[0].mxu0
        %v312 = vadd.f32 %v194, %v311
        %v313 = vpop.f32.mrb[0].mxu0
        %v314 = vpop.f32.mrb[0].mxu0
        %v315 = vadd.f32 %v194, %v314
        %v316 = vpop.f32.mrb[0].mxu0
        %317 = vdwg.mxu0
        %318 = vst [vmem:[%s164] sm:$0xff] %v288
        %319 = vst [vmem:[%s164 + $0x8] sm:$0xff] %v291
        %320 = vst [vmem:[%s164 + $0x10] sm:$0xff] %v296
        %321 = vst [vmem:[%s164 + $0x18] sm:$0xff] %v299
        %322 = vst [vmem:[%s164 + $0x20] sm:$0xff] %v304
        %323 = vst [vmem:[%s164 + $0x28] sm:$0xff] %v307
        %324 = vst [vmem:[%s164 + $0x30] sm:$0xff] %v312
        %325 = vst [vmem:[%s164 + $0x38] sm:$0xff] %v315
        %s326 = sand.u32 %s93, 1
        %s327 = scalar_lea.sflag [#allocation3], %s326
        %s328 = sand.u32 %s93, 1
        %s329 = smul.addr %s328, 64
        %s330 = scalar_lea.vmem [#allocation2], %s329
        // Predicated region
        $region33: #{patch_embedding.1} parent=31 // pred_check
          %p331 = pneg %p103
        $region34: #{patch_embedding.1} parent=31 // pred_check_branch
          %333 = sbr.rel (%p331) target = $region36
        $region35: #{patch_embedding.1} parent=31 // pred_region
          %s334 = smul.u32 8, %s17
          %s336 = ssub.s32 1024, 1024
          %337 = vsyncadd %s327, %s336
          %s338 = smul.addr %s334, 128
          %s339 = scalar_lea.hbm %s3, %s338
          %s340 = sshll.u32 %s330, 4
          %s341 = int_to_ptr.vmem [resolvable:$true] %s340
          %346 = dma.vmem_to_hbm [thread:$0]  %s341, 1024, %s339, %s327, 128, 128, 8
        $region36: #{patch_embedding.1} parent=31 // pred_fallthru
          _
      $region32: #{patch_embedding.1} parent=5 // pred_fallthru
        _
      %p347 = scmp.le.s32.totalorder 2, %s12
      // Predicated region
      $region37: #{patch_embedding.1} parent=5 // pred_check
        %p348 = pneg %p347
      $region38: #{patch_embedding.1} parent=5 // pred_check_branch
        %350 = sbr.rel (%p348) target = $region40
      $region39: #{patch_embedding.1} parent=5 // pred_region
        %s351 = ssub.s32 %s12, 2
        // Predicated region
        $region41: #{patch_embedding.1} parent=39 // pred_check
          %p352 = pneg %p109
        $region42: #{patch_embedding.1} parent=39 // pred_check_branch
          %354 = sbr.rel (%p352) target = $region44
        $region43: #{patch_embedding.1} parent=39 // pred_region
          %s355 = sand.u32 %s94, 1
          %s356 = scalar_lea.sflag [#allocation3], %s355
          %s357 = sand.u32 %s94, 1
          %s358 = smul.addr %s357, 64
          %s359 = scalar_lea.vmem [#allocation2], %s358
          %360 = dma.done %s356, 1024
        $region44: #{patch_embedding.1} parent=39 // pred_fallthru
          _
      $region40: #{patch_embedding.1} parent=5 // pred_fallthru
        _
    $region6: #{patch_embedding.1} parent=1 // loop_footer
      %s16 = sadd.s32 1, %s12
    $region7: #{patch_embedding.1} parent=1 // loop_footer_branch
      %11 = sbr.rel target = $region3
    $region8: #{patch_embedding.1} parent=1 // loop_exit
      _
    %361 = vsyncpa [#allocation3], 1
    %s362 = scalar_lea.sflag [#allocation3], 1
    %363 = vsyncpa %s362, 1

</llo_original>
